<compile_context>
chip_gen: v6e
topology: v6e:2x2x1
jax: 0.10.0
libtpu: 0.0.40
codegen_flags: <defaults>
</compile_context>

<pallas_src>
import functools
import math

import jax
import jax.numpy as jnp
from jax import lax
from jax.experimental import pallas as pl
from jax.experimental.pallas import tpu as pltpu


SHRINK_THRES = 0.0025
HSR_EPS = 1e-12       # epsilon in hard_shrink_relu
NORM_EPS = 1e-12      # eps of F.normalize (clamp_min on the L1 norm)


def _round_up(x, m):
    return ((x + m - 1) // m) * m


def _tpu_generation():
    """Best-effort TPU generation (5 / 6 / 7) from device_kind; None if unknown."""
    try:
        dev = jax.devices()[0]
        if dev.platform != "tpu":
            return None
        kind = dev.device_kind.lower()
    except Exception:
        return None
    for gen in (7, 6, 5):
        if f"v{gen}" in kind:
            return gen
    return None


def _lane_align(gen):
    # v6e / v7x MXUs are 2x256x256 -> 256-aligned operand dims use full passes;
    # v5e (4x128x128) is already optimal at 128.
    return 256 if gen in (6, 7) else 128


def memory_unit_kernel(x_ref, w_ref, out_ref, att_ref, *, mem_dim, matmul_dtype):
    # x: [TB, FEA_P] tile of the batch (f32 or bf16); w: [MEM_P, FEA_P] resident
    # weight (f32 or bf16 depending on matmul_dtype).
    xm = x_ref[...].astype(matmul_dtype)
    wm = w_ref[...].astype(matmul_dtype)

    # att = x @ w.T, expressed as a contraction over the shared fea (lane) axis
    # so no transposed copy of the weight is materialized.
    att = lax.dot_general(
        xm, wm,
        dimension_numbers=(((1,), (1,)), ((), ())),
        preferred_element_type=jnp.float32,
    )  # [TB, MEM_P] f32

    # Mask padded memory slots (zero weight rows) out of the softmax.
    mem_p = att.shape[1]
    if mem_p != mem_dim:
        col = lax.broadcasted_iota(jnp.int32, att.shape, 1)
        att = jnp.where(col < mem_dim, att, -jnp.inf)

    # softmax over dim=1 (mem_dim), in f32. Row-wise reciprocals stay exact
    # ([TB,1] only, and approx would shift threshold crossings).
    m = jnp.max(att, axis=1, keepdims=True)
    e = jnp.exp(att - m)
    att = e * pl.reciprocal(jnp.sum(e, axis=1, keepdims=True), approx=False)

    # hard_shrink_relu(att, lambd=thres, eps=1e-12): for att >= 0 and eps=1e-12
    # the factor (att-thres)/(att-thres+eps) rounds to 1 in f32 for anything
    # meaningfully above the threshold, so this is numerically the same as the
    # literal PyTorch formula while removing ~5 full [TB, MEM_P] VPU passes.
    att = jnp.where(att > SHRINK_THRES, att, 0.0)

    # F.normalize(att, p=1, dim=1): att >= 0 here, so the L1 norm is a plain sum;
    # reciprocal-then-multiply instead of a full [TB, MEM_P] divide.
    l1 = jnp.sum(att, axis=1, keepdims=True)
    att = att * pl.reciprocal(jnp.maximum(l1, NORM_EPS), approx=False)

    # output = att @ weight  -> [TB, FEA_P]
    out = jnp.dot(att.astype(matmul_dtype), wm, preferred_element_type=jnp.float32)

    out_ref[...] = out.astype(out_ref.dtype)
    att_ref[...] = att.astype(att_ref.dtype)


def prepare_memory_weight(weight, *, matmul_dtype=jnp.float32):
    """Pad (and optionally bf16-cast) the memory weight ONCE, outside the hot path.

    Pass the result to memory_unit_forward(..., mem_dim=, fea_dim=) to avoid a
    per-call HBM read+write for the pad/cast.
    """
    gen = _tpu_generation()
    align = _lane_align(gen)
    mem_dim, fea_dim = weight.shape
    mem_p = _round_up(mem_dim, align)
    fea_p = _round_up(fea_dim, align)
    w_p = weight
    if (mem_p, fea_p) != (mem_dim, fea_dim):
        w_p = jnp.pad(weight, ((0, mem_p - mem_dim), (0, fea_p - fea_dim)))
    if matmul_dtype == jnp.bfloat16:
        w_p = w_p.astype(jnp.bfloat16)
    return w_p


def memory_unit_forward(x, weight, *, mem_dim=None, fea_dim=None, block_b=256,
                        matmul_dtype=jnp.float32, out_dtype=jnp.float32,
                        trim_outputs=True):
    """x: [B, fea_dim]; weight: [mem_dim, fea_dim] or a prepare_memory_weight()
    result (then pass the logical mem_dim / fea_dim explicitly).

    matmul_dtype: jnp.float32 (exact) or jnp.bfloat16 (fast MXU path on
    v5e/v6e/v7x — all have bf16-native MXUs; softmax / shrink / L1-normalize
    stay f32 regardless).
    """
    B, x_fea = x.shape
    if fea_dim is None:
        fea_dim = x_fea
    if mem_dim is None:
        mem_dim = weight.shape[0]
    assert x_fea == fea_dim

    gen = _tpu_generation()
    align = _lane_align(gen)

    # Lane-dense padded operand dims (covers both raw and pre-padded weights).
    MEM_P = _round_up(max(weight.shape[0], mem_dim), align)
    FEA_P = _round_up(max(weight.shape[1], fea_dim), align)

    # Batch tile: multiple of 8 sublanes; cap per generation; ensure >=2 grid
    # tiles for megacore sharding when the batch is large enough.
    B8 = _round_up(B, 8)
    tb_cap = 512 if gen in (5, 6) else 256
    TB = min(block_b, tb_cap, B8)
    if B8 >= 256:
        TB = min(TB, max(128, _round_up((B8 + 1) // 2, 8)))
    TB = max(8, _round_up(TB, 8))
    B_P = _round_up(B8, TB)

    # Weight pad / cast (no-op if already prepared by prepare_memory_weight).
    w_p = weight
    if w_p.shape != (MEM_P, FEA_P):
        w_p = jnp.pad(w_p, ((0, MEM_P - w_p.shape[0]), (0, FEA_P - w_p.shape[1])))
    if matmul_dtype == jnp.bfloat16 and w_p.dtype != jnp.bfloat16:
        w_p = w_p.astype(jnp.bfloat16)

    # x pad (+ bf16 cast in the wrapper to halve the x DMA on the bf16 path).
    x_p = x
    if (B_P, FEA_P) != x.shape:
        x_p = jnp.pad(x, ((0, B_P - B), (0, FEA_P - x_fea)))
    if matmul_dtype == jnp.bfloat16 and x_p.dtype != jnp.bfloat16:
        x_p = x_p.astype(jnp.bfloat16)

    # Generation-aware VMEM budget: 96 MiB on v5e/v6e (128 MiB physical),
    # 48 MiB on v7x (64 MiB/TC) and for unknown chips.
    vmem_limit = 96 * 1024 * 1024 if gen in (5, 6) else 48 * 1024 * 1024

    kernel = functools.partial(
        memory_unit_kernel, mem_dim=mem_dim, matmul_dtype=matmul_dtype
    )

    # Advisory cost estimate: two GEMMs + one exp per att element.
    flops = 4 * B_P * MEM_P * FEA_P
    bytes_accessed = int(
        x_p.dtype.itemsize * B_P * FEA_P
        + w_p.dtype.itemsize * MEM_P * FEA_P
        + jnp.dtype(out_dtype).itemsize * (B_P * FEA_P + B_P * MEM_P)
    )
    cost = pl.CostEstimate(
        flops=flops, transcendentals=B_P * MEM_P, bytes_accessed=bytes_accessed
    )

    def _build(single_buffer_weight):
        w_spec_kwargs = {}
        if single_buffer_weight:
            # Constant index_map -> the default second buffer is pure VMEM waste.
            w_spec_kwargs = dict(pipeline_mode=pl.Buffered(1))
        return pl.pallas_call(
            kernel,
            out_shape=(
                jax.ShapeDtypeStruct((B_P, FEA_P), out_dtype),   # output
                jax.ShapeDtypeStruct((B_P, MEM_P), out_dtype),   # att_weight
            ),
            grid=(B_P // TB,),
            in_specs=[
                pl.BlockSpec((TB, FEA_P), lambda i: (i, 0)),             # x batch tile
                pl.BlockSpec((MEM_P, FEA_P), lambda i: (0, 0), **w_spec_kwargs),  # resident weight
            ],
            out_specs=(
                pl.BlockSpec((TB, FEA_P), lambda i: (i, 0)),
                pl.BlockSpec((TB, MEM_P), lambda i: (i, 0)),
            ),
            compiler_params=pltpu.CompilerParams(
                dimension_semantics=("parallel",),
                vmem_limit_bytes=vmem_limit,
            ),
            cost_estimate=cost,
        )

    try:
        out_p, att_p = _build(True)(x_p, w_p)
    except Exception:
        # pipeline_mode=pl.Buffered(1) not accepted by this JAX version / lowering;
        # fall back to the default double-buffered resident weight.
        out_p, att_p = _build(False)(x_p, w_p)

    if trim_outputs:
        return out_p[:B, :fea_dim], att_p[:B, :mem_dim]
    return out_p, att_p


def memory_unit_reference(x, weight, matmul_dtype=jnp.float32):
    """Pure-JAX reference mirroring the PyTorch forward (literal hard_shrink_relu).

    With matmul_dtype=bfloat16 the matmul inputs are rounded to bf16 (matching
    the kernel's fast MXU path) while all math runs in f32.
    """
    xm = x.astype(matmul_dtype).astype(jnp.float32)
    wm = weight.astype(matmul_dtype).astype(jnp.float32)
    att = xm @ wm.T
    att = jax.nn.softmax(att, axis=1)
    shifted = att - SHRINK_THRES
    att = jnp.maximum(shifted, 0.0) * att / (jnp.abs(shifted) + HSR_EPS)
    att = att / jnp.maximum(jnp.sum(jnp.abs(att), axis=1, keepdims=True), NORM_EPS)
    out = att.astype(matmul_dtype).astype(jnp.float32) @ wm
    return out, att


if __name__ == "__main__":
    # Small shapes consistent with the module: input [B, fea_dim], memory [mem_dim, fea_dim].
    B = 8
    fea_dim = 32
    mem_dim = 64

    key = jax.random.PRNGKey(0)
    k_x, k_w = jax.random.split(key)

    # Deterministic parameter init matching reset_parameters():
    # uniform(-stdv, stdv) with stdv = 1/sqrt(fea_dim).
    stdv = 1.0 / math.sqrt(fea_dim)
    weight = jax.random.uniform(
        k_w, (mem_dim, fea_dim), dtype=jnp.float32, minval=-stdv, maxval=stdv
    )
    x = jax.random.normal(k_x, (B, fea_dim), dtype=jnp.float32)

    # --- f32 MXU path (exact) with a pre-prepared (padded) weight ---
    w_prep = prepare_memory_weight(weight, matmul_dtype=jnp.float32)
    out, att = memory_unit_forward(
        x, w_prep, mem_dim=mem_dim, fea_dim=fea_dim, matmul_dtype=jnp.float32
    )
    jax.block_until_ready((out, att))
    out_ref, att_ref = memory_unit_reference(x, weight)
    assert out.shape == (B, fea_dim) and att.shape == (B, mem_dim)
    assert jnp.allclose(out, out_ref, atol=1e-5, rtol=1e-5)
    assert jnp.allclose(att, att_ref, atol=1e-5, rtol=1e-5)

    # --- bf16 MXU path (fast path on v5e/v6e/v7x): vs. bf16-matched reference ---
    w_prep_bf = prepare_memory_weight(weight, matmul_dtype=jnp.bfloat16)
    out_bf, att_bf = memory_unit_forward(
        x, w_prep_bf, mem_dim=mem_dim, fea_dim=fea_dim, matmul_dtype=jnp.bfloat16
    )
    jax.block_until_ready((out_bf, att_bf))
    out_bref, att_bref = memory_unit_reference(x, weight, matmul_dtype=jnp.bfloat16)
    assert jnp.allclose(out_bf, out_bref, atol=5e-3, rtol=1e-2)
    assert jnp.allclose(att_bf, att_bref, atol=5e-3, rtol=1e-2)

    print("KERNEL_OK")
</pallas_src>

<mosaic_0001>
module attributes {stable_mosaic.version = 11 : i64} {
  func.func @memory_unit_kernel(%arg0: i32, %arg1: memref<8x128xf32, #tpu.memory_space<vmem>>, %arg2: memref<128x128xf32, #tpu.memory_space<vmem>>, %arg3: memref<8x128xf32, #tpu.memory_space<vmem>>, %arg4: memref<8x128xf32, #tpu.memory_space<vmem>>) attributes {dimension_semantics = [#tpu.dimension_semantics<parallel>], iteration_bounds = array<i64: 1>, scalar_prefetch = 0 : i64, scratch_operands = 0 : i64, tpu.core_type = #tpu.core_type<tc>, window_params = [{transform_indices = @transform_0, window_bounds = array<i64: 8, 128>}, {pipeline_mode = #tpu.pipeline_mode<synchronous>, transform_indices = @transform_1, window_bounds = array<i64: 128, 128>}, {transform_indices = @transform_2, window_bounds = array<i64: 8, 128>}, {transform_indices = @transform_3, window_bounds = array<i64: 8, 128>}]} {
    %c0 = arith.constant 0 : index
    %c0_0 = arith.constant 0 : index
    %0 = vector.load %arg1[%c0, %c0_0] : memref<8x128xf32, #tpu.memory_space<vmem>>, vector<8x128xf32>
    %c0_1 = arith.constant 0 : index
    %c0_2 = arith.constant 0 : index
    %1 = vector.load %arg2[%c0_1, %c0_2] : memref<128x128xf32, #tpu.memory_space<vmem>>, vector<128x128xf32>
    %cst = arith.constant dense<0.000000e+00> : vector<8x128xf32>
    %2 = tpu.matmul %0, %1, %cst {dimension_numbers = #tpu.dot_dimension_numbers<[1], [1], [0], [0], [0, 0, 1, 0], [], []>} : vector<8x128xf32>, vector<128x128xf32>, vector<8x128xf32> -> vector<8x128xf32>
    %3 = tpu.iota {dimensions = array<i32: 1>} : vector<8x128xi32>
    %c64_i32 = arith.constant 64 : i32
    %4 = vector.broadcast %c64_i32 : i32 to vector<8x128xi32>
    %5 = arith.cmpi slt, %3, %4 : vector<8x128xi32>
    %cst_3 = arith.constant 0xFF800000 : f32
    %6 = vector.broadcast %cst_3 : f32 to vector<8x128xf32>
    %7 = arith.select %5, %2, %6 : vector<8x128xi1>, vector<8x128xf32>
    %cst_4 = arith.constant dense<0xFF800000> : vector<8xf32>
    %8 = vector.multi_reduction <maximumf>, %7, %cst_4 [1] : vector<8x128xf32> to vector<8xf32>
    %9 = vector.shape_cast %8 : vector<8xf32> to vector<8x1xf32>
    %10 = vector.broadcast %9 : vector<8x1xf32> to vector<8x128xf32>
    %11 = arith.subf %7, %10 : vector<8x128xf32>
    %12 = math.exp %11 : vector<8x128xf32>
    %cst_5 = arith.constant dense<0.000000e+00> : vector<8xf32>
    %13 = vector.multi_reduction <add>, %12, %cst_5 [1] : vector<8x128xf32> to vector<8xf32>
    %14 = vector.shape_cast %13 : vector<8xf32> to vector<8x1xf32>
    %15 = tpu.reciprocal %14 : vector<8x1xf32> -> vector<8x1xf32>
    %16 = vector.broadcast %15 : vector<8x1xf32> to vector<8x128xf32>
    %17 = arith.mulf %12, %16 : vector<8x128xf32>
    %cst_6 = arith.constant 2.500000e-03 : f32
    %18 = vector.broadcast %cst_6 : f32 to vector<8x128xf32>
    %19 = arith.cmpf ogt, %17, %18 : vector<8x128xf32>
    %cst_7 = arith.constant 0.000000e+00 : f32
    %20 = vector.broadcast %cst_7 : f32 to vector<8x128xf32>
    %21 = arith.select %19, %17, %20 : vector<8x128xi1>, vector<8x128xf32>
    %cst_8 = arith.constant dense<0.000000e+00> : vector<8xf32>
    %22 = vector.multi_reduction <add>, %21, %cst_8 [1] : vector<8x128xf32> to vector<8xf32>
    %23 = vector.shape_cast %22 : vector<8xf32> to vector<8x1xf32>
    %cst_9 = arith.constant 9.99999996E-13 : f32
    %24 = vector.broadcast %cst_9 : f32 to vector<8x1xf32>
    %25 = arith.maximumf %23, %24 : vector<8x1xf32>
    %26 = tpu.reciprocal %25 : vector<8x1xf32> -> vector<8x1xf32>
    %27 = vector.broadcast %26 : vector<8x1xf32> to vector<8x128xf32>
    %28 = arith.mulf %21, %27 : vector<8x128xf32>
    %cst_10 = arith.constant dense<0.000000e+00> : vector<8x128xf32>
    %29 = tpu.matmul %28, %1, %cst_10 {dimension_numbers = #tpu.dot_dimension_numbers<[1], [0], [0], [1], [0, 0, 1, 1], [], []>} : vector<8x128xf32>, vector<128x128xf32>, vector<8x128xf32> -> vector<8x128xf32>
    %c0_11 = arith.constant 0 : index
    %c0_12 = arith.constant 0 : index
    %30 = vector.load %arg3[%c0_11, %c0_12] : memref<8x128xf32, #tpu.memory_space<vmem>>, vector<8x128xf32>
    tpu.vector_store %arg3[%c0_11, %c0_12], %29 {strides = array<i32>} : memref<8x128xf32, #tpu.memory_space<vmem>>, vector<8x128xf32>,
    %c0_13 = arith.constant 0 : index
    %c0_14 = arith.constant 0 : index
    %31 = vector.load %arg4[%c0_13, %c0_14] : memref<8x128xf32, #tpu.memory_space<vmem>>, vector<8x128xf32>
    tpu.vector_store %arg4[%c0_13, %c0_14], %28 {strides = array<i32>} : memref<8x128xf32, #tpu.memory_space<vmem>>, vector<8x128xf32>,
    return
  }
  func.func @transform_0(%arg0: i32) -> (i32, i32) {
    %c0_i32 = arith.constant 0 : i32
    %c0_i32_0 = arith.constant 0 : i32
    return %arg0, %c0_i32 : i32, i32
  }
  func.func @transform_1(%arg0: i32) -> (i32, i32) {
    %c0_i32 = arith.constant 0 : i32
    %c0_i32_0 = arith.constant 0 : i32
    %c0_i32_1 = arith.constant 0 : i32
    return %c0_i32, %c0_i32_0 : i32, i32
  }
  func.func @transform_2(%arg0: i32) -> (i32, i32) {
    %c0_i32 = arith.constant 0 : i32
    %c0_i32_0 = arith.constant 0 : i32
    return %arg0, %c0_i32 : i32, i32
  }
  func.func @transform_3(%arg0: i32) -> (i32, i32) {
    %c0_i32 = arith.constant 0 : i32
    %c0_i32_0 = arith.constant 0 : i32
    return %arg0, %c0_i32 : i32, i32
  }
}

module attributes {stable_mosaic.version = 11 : i64} {
  func.func @memory_unit_kernel(%arg0: i32, %arg1: memref<8x128xf32, #tpu.memory_space<vmem>>, %arg2: memref<128x128xf32, #tpu.memory_space<vmem>>, %arg3: memref<8x128xf32, #tpu.memory_space<vmem>>, %arg4: memref<8x128xf32, #tpu.memory_space<vmem>>) attributes {dimension_semantics = [#tpu.dimension_semantics<parallel>], iteration_bounds = array<i64: 1>, scalar_prefetch = 0 : i64, scratch_operands = 0 : i64, tpu.core_type = #tpu.core_type<tc>, window_params = [{transform_indices = @transform_0, window_bounds = array<i64: 8, 128>}, {pipeline_mode = #tpu.pipeline_mode<synchronous>, transform_indices = @transform_1, window_bounds = array<i64: 128, 128>}, {transform_indices = @transform_2, window_bounds = array<i64: 8, 128>}, {transform_indices = @transform_3, window_bounds = array<i64: 8, 128>}]} {
    %c0 = arith.constant 0 : index
    %c0_0 = arith.constant 0 : index
    %0 = vector.load %arg1[%c0, %c0_0] : memref<8x128xf32, #tpu.memory_space<vmem>>, vector<8x128xf32>
    %c0_1 = arith.constant 0 : index
    %c0_2 = arith.constant 0 : index
    %1 = vector.load %arg2[%c0_1, %c0_2] : memref<128x128xf32, #tpu.memory_space<vmem>>, vector<128x128xf32>
    %cst = arith.constant dense<0.000000e+00> : vector<8x128xf32>
    %2 = tpu.matmul %0, %1, %cst {dimension_numbers = #tpu.dot_dimension_numbers<[1], [1], [0], [0], [0, 0, 1, 0], [], []>} : vector<8x128xf32>, vector<128x128xf32>, vector<8x128xf32> -> vector<8x128xf32>
    %3 = tpu.iota {dimensions = array<i32: 1>} : vector<8x128xi32>
    %c64_i32 = arith.constant 64 : i32
    %4 = vector.broadcast %c64_i32 : i32 to vector<8x128xi32>
    %5 = arith.cmpi slt, %3, %4 : vector<8x128xi32>
    %cst_3 = arith.constant 0xFF800000 : f32
    %6 = vector.broadcast %cst_3 : f32 to vector<8x128xf32>
    %7 = arith.select %5, %2, %6 : vector<8x128xi1>, vector<8x128xf32>
    %cst_4 = arith.constant dense<0xFF800000> : vector<8xf32>
    %8 = vector.multi_reduction <maximumf>, %7, %cst_4 [1] : vector<8x128xf32> to vector<8xf32>
    %9 = vector.shape_cast %8 : vector<8xf32> to vector<8x1xf32>
    %10 = vector.broadcast %9 : vector<8x1xf32> to vector<8x128xf32>
    %11 = arith.subf %7, %10 : vector<8x128xf32>
    %12 = math.exp %11 : vector<8x128xf32>
    %cst_5 = arith.constant dense<0.000000e+00> : vector<8xf32>
    %13 = vector.multi_reduction <add>, %12, %cst_5 [1] : vector<8x128xf32> to vector<8xf32>
    %14 = vector.shape_cast %13 : vector<8xf32> to vector<8x1xf32>
    %15 = tpu.reciprocal %14 : vector<8x1xf32> -> vector<8x1xf32>
    %16 = vector.broadcast %15 : vector<8x1xf32> to vector<8x128xf32>
    %17 = arith.mulf %12, %16 : vector<8x128xf32>
    %cst_6 = arith.constant 2.500000e-03 : f32
    %18 = vector.broadcast %cst_6 : f32 to vector<8x128xf32>
    %19 = arith.cmpf ogt, %17, %18 : vector<8x128xf32>
    %cst_7 = arith.constant 0.000000e+00 : f32
    %20 = vector.broadcast %cst_7 : f32 to vector<8x128xf32>
    %21 = arith.select %19, %17, %20 : vector<8x128xi1>, vector<8x128xf32>
    %cst_8 = arith.constant dense<0.000000e+00> : vector<8xf32>
    %22 = vector.multi_reduction <add>, %21, %cst_8 [1] : vector<8x128xf32> to vector<8xf32>
    %23 = vector.shape_cast %22 : vector<8xf32> to vector<8x1xf32>
    %cst_9 = arith.constant 9.99999996E-13 : f32
    %24 = vector.broadcast %cst_9 : f32 to vector<8x1xf32>
    %25 = arith.maximumf %23, %24 : vector<8x1xf32>
    %26 = tpu.reciprocal %25 : vector<8x1xf32> -> vector<8x1xf32>
    %27 = vector.broadcast %26 : vector<8x1xf32> to vector<8x128xf32>
    %28 = arith.mulf %21, %27 : vector<8x128xf32>
    %cst_10 = arith.constant dense<0.000000e+00> : vector<8x128xf32>
    %29 = tpu.matmul %28, %1, %cst_10 {dimension_numbers = #tpu.dot_dimension_numbers<[1], [0], [0], [1], [0, 0, 1, 1], [], []>} : vector<8x128xf32>, vector<128x128xf32>, vector<8x128xf32> -> vector<8x128xf32>
    %c0_11 = arith.constant 0 : index
    %c0_12 = arith.constant 0 : index
    %30 = vector.load %arg3[%c0_11, %c0_12] : memref<8x128xf32, #tpu.memory_space<vmem>>, vector<8x128xf32>
    tpu.vector_store %arg3[%c0_11, %c0_12], %29 {strides = array<i32>} : memref<8x128xf32, #tpu.memory_space<vmem>>, vector<8x128xf32>,
    %c0_13 = arith.constant 0 : index
    %c0_14 = arith.constant 0 : index
    %31 = vector.load %arg4[%c0_13, %c0_14] : memref<8x128xf32, #tpu.memory_space<vmem>>, vector<8x128xf32>
    tpu.vector_store %arg4[%c0_13, %c0_14], %28 {strides = array<i32>} : memref<8x128xf32, #tpu.memory_space<vmem>>, vector<8x128xf32>,
    return
  }
  func.func @transform_0(%arg0: i32) -> (i32, i32) {
    %c0_i32 = arith.constant 0 : i32
    %c0_i32_0 = arith.constant 0 : i32
    return %arg0, %c0_i32 : i32, i32
  }
  func.func @transform_1(%arg0: i32) -> (i32, i32) {
    %c0_i32 = arith.constant 0 : i32
    %c0_i32_0 = arith.constant 0 : i32
    %c0_i32_1 = arith.constant 0 : i32
    return %c0_i32, %c0_i32_0 : i32, i32
  }
  func.func @transform_2(%arg0: i32) -> (i32, i32) {
    %c0_i32 = arith.constant 0 : i32
    %c0_i32_0 = arith.constant 0 : i32
    return %arg0, %c0_i32 : i32, i32
  }
  func.func @transform_3(%arg0: i32) -> (i32, i32) {
    %c0_i32 = arith.constant 0 : i32
    %c0_i32_0 = arith.constant 0 : i32
    return %arg0, %c0_i32 : i32, i32
  }
}

</mosaic_0001>

<llo_original>
// kernel: tpu_custom_call.1
$region0: #{tpu_custom_call.1}
  #allocation0 [shape = 'u32[]', space=smem, size = 0x4, offset = 0x4, fixed_abs, tag = 'smem constant byte address 0x4 - core index']
  #allocation1 [shape = 'u32[144,128]{1,0:T(1,128)}', space=vmem, size = 0x12000, scoped, tag = 'internal scratch']
  %s0 = inlined_call_operand.hbm [shape: f32[8,128], index: 0, kind: input, shape index: {}]
  %s1 = inlined_call_operand.hbm [shape: f32[128,128], index: 1, kind: input, shape index: {}]
  %s2 = inlined_call_operand.hbm [shape: f32[8,128], index: 2, kind: output, shape index: {0}]
  %s3 = inlined_call_operand.hbm [shape: f32[8,128], index: 3, kind: output, shape index: {1}]
  %4 = xla_tuple %s2, %s3
  %s5 = sld [smem:[#allocation0]]
  $region34: #{tpu_custom_call.1} parent=0
    _
  %s7 = ssub.s32 1, %s5
  %s8 = scalar_select 0, %s7, %s5
  $region1: #{tpu_custom_call.1} parent=0
    #allocation2 [shape = 'u8[4096]{0}', space=vmem, size = 0x1000, scoped, tag = 'input window, operand 0, single buffered']
    #allocation3 [shape = 's32[1]{0}', space=sflag, size = 0x4, scoped, tag = 'scoped memory for tpu_custom_call.1']
    #allocation4 [shape = 's32[1]{0}', space=sflag, size = 0x4, scoped, tag = 'scoped memory for tpu_custom_call.1']
    #allocation5 [shape = 'u8[65536]{0}', space=vmem, size = 0x10000, scoped, tag = 'input window, operand 1, single buffered']
    #allocation6 [shape = 's32[1]{0}', space=sflag, size = 0x4, scoped, tag = 'scoped memory for tpu_custom_call.1']
    #allocation7 [shape = 'u8[4096]{0}', space=vmem, size = 0x1000, scoped, tag = 'output window, operand 0, single buffered']
    #allocation8 [shape = 'u8[4096]{0}', space=vmem, size = 0x1000, scoped, tag = 'output window, operand 1, single buffered']
    #allocation9 [shape = 's32[1]{0}', space=sflag, size = 0x4, scoped, tag = 'scoped memory for tpu_custom_call.1']
    %9 = vsyncpa [#allocation3], 0
    %10 = vsyncpa [#allocation6], 0
    %11 = vsyncpa [#allocation4], 0
    %12 = vsyncpa [#allocation9], 0
    // Predicated region
    $region2: #{tpu_custom_call.1} parent=1 // pred_check
      _
    $region3: #{tpu_custom_call.1} parent=1 // pred_check_branch
      %14 = sbr.rel (0) target = $region5
    $region4: #{tpu_custom_call.1} parent=1 // pred_region
      %s16 = ssub.s32 128, 128
      %17 = vsyncadd [#allocation3], %s16
      %s19 = sshll.u32 [#allocation2], 4
      %s20 = int_to_ptr.vmem [resolvable:$true] %s19
      %22 = dma.hbm_to_vmem [thread:$0]  %s0, 128, %s20, [#allocation3]
    $region5: #{tpu_custom_call.1} parent=1 // pred_fallthru
      _
    // Predicated region
    $region6: #{tpu_custom_call.1} parent=1 // pred_check
      _
    $region7: #{tpu_custom_call.1} parent=1 // pred_check_branch
      %24 = sbr.rel (0) target = $region9
    $region8: #{tpu_custom_call.1} parent=1 // pred_region
      %s26 = ssub.s32 2048, 2048
      %27 = vsyncadd [#allocation6], %s26
      %s28 = sshll.u32 [#allocation5], 4
      %s29 = int_to_ptr.vmem [resolvable:$true] %s28
      %34 = dma.hbm_to_vmem [thread:$0]  %s1, 2048, %s29, [#allocation6], 128, 128, 8
    $region9: #{tpu_custom_call.1} parent=1 // pred_fallthru
      _
    // Predicated region
    $region10: #{tpu_custom_call.1} parent=1 // pred_check
      _
    $region11: #{tpu_custom_call.1} parent=1 // pred_check_branch
      %36 = sbr.rel (0) target = $region13
    $region12: #{tpu_custom_call.1} parent=1 // pred_region
      %37 = dma.done [#allocation3], 128
    $region13: #{tpu_custom_call.1} parent=1 // pred_fallthru
      _
    // Predicated region
    $region14: #{tpu_custom_call.1} parent=1 // pred_check
      _
    $region15: #{tpu_custom_call.1} parent=1 // pred_check_branch
      %39 = sbr.rel (0) target = $region17
    $region16: #{tpu_custom_call.1} parent=1 // pred_region
      %40 = dma.done [#allocation6], 2048
    $region17: #{tpu_custom_call.1} parent=1 // pred_fallthru
      _
    %v41 = vld [vmem:[#allocation2] sm:$0xff]
    %v42 = vld [vmem:[#allocation5] sm:$0xff]
    %v43 = vld [vmem:[#allocation5 + $0x8] sm:$0xff]
    %v44 = vld [vmem:[#allocation5 + $0x10] sm:$0xff]
    %v45 = vld [vmem:[#allocation5 + $0x18] sm:$0xff]
    %v46 = vld [vmem:[#allocation5 + $0x20] sm:$0xff]
    %v47 = vld [vmem:[#allocation5 + $0x28] sm:$0xff]
    %v48 = vld [vmem:[#allocation5 + $0x30] sm:$0xff]
    %v49 = vld [vmem:[#allocation5 + $0x38] sm:$0xff]
    %v50 = vld [vmem:[#allocation5 + $0x40] sm:$0xff]
    %v51 = vld [vmem:[#allocation5 + $0x48] sm:$0xff]
    %v52 = vld [vmem:[#allocation5 + $0x50] sm:$0xff]
    %v53 = vld [vmem:[#allocation5 + $0x58] sm:$0xff]
    %v54 = vld [vmem:[#allocation5 + $0x60] sm:$0xff]
    %v55 = vld [vmem:[#allocation5 + $0x68] sm:$0xff]
    %v56 = vld [vmem:[#allocation5 + $0x70] sm:$0xff]
    %v57 = vld [vmem:[#allocation5 + $0x78] sm:$0xff]
    %58 = vmatprep.subr.mxu0 0.0
    %59 = vmatpush1.xpose.msra.mxu0 %v57
    %60 = vmatprep.subr.mxu0 0.0
    %61 = vmatpush1.xpose.msra.mxu0 %v56
    %62 = vmatprep.subr.mxu0 0.0
    %63 = vmatpush1.xpose.msra.mxu0 %v55
    %64 = vmatprep.subr.mxu0 0.0
    %65 = vmatpush1.xpose.msra.mxu0 %v54
    %66 = vmatprep.subr.mxu0 0.0
    %67 = vmatpush1.xpose.msra.mxu0 %v53
    %68 = vmatprep.subr.mxu0 0.0
    %69 = vmatpush1.xpose.msra.mxu0 %v52
    %70 = vmatprep.subr.mxu0 0.0
    %71 = vmatpush1.xpose.msra.mxu0 %v51
    %72 = vmatprep.subr.mxu0 0.0
    %73 = vmatpush1.xpose.msra.mxu0 %v50
    %74 = vmatprep.subr.mxu0 0.0
    %75 = vmatpush1.xpose.msra.mxu0 %v49
    %76 = vmatprep.subr.mxu0 0.0
    %77 = vmatpush1.xpose.msra.mxu0 %v48
    %78 = vmatprep.subr.mxu0 0.0
    %79 = vmatpush1.xpose.msra.mxu0 %v47
    %80 = vmatprep.subr.mxu0 0.0
    %81 = vmatpush1.xpose.msra.mxu0 %v46
    %82 = vmatprep.subr.mxu0 0.0
    %83 = vmatpush1.xpose.msra.mxu0 %v45
    %84 = vmatprep.subr.mxu0 0.0
    %85 = vmatpush1.xpose.msra.mxu0 %v44
    %86 = vmatprep.subr.mxu0 0.0
    %87 = vmatpush1.xpose.msra.mxu0 %v43
    %88 = vmatprep.subr.mxu0 0.0
    %89 = vmatpush1.xpose.msra.mxu0 %v42
    %90 = vmatprep.subr.mxu0 0.0
    %91 = vmatpush2.xpose.msra.mxu0 0.0
    %92 = vmatprep.subr.mxu0 0.0
    %93 = vmatpush2.xpose.msra.mxu0 0.0
    %94 = vmatprep.subr.mxu0 0.0
    %95 = vmatpush2.xpose.msra.mxu0 0.0
    %96 = vmatprep.subr.mxu0 0.0
    %97 = vmatpush2.xpose.msra.mxu0 0.0
    %98 = vmatprep.subr.mxu0 0.0
    %99 = vmatpush2.xpose.msra.mxu0 0.0
    %100 = vmatprep.subr.mxu0 0.0
    %101 = vmatpush2.xpose.msra.mxu0 0.0
    %102 = vmatprep.subr.mxu0 0.0
    %103 = vmatpush2.xpose.msra.mxu0 0.0
    %104 = vmatprep.subr.mxu0 0.0
    %105 = vmatpush2.xpose.msra.mxu0 0.0
    %106 = vmatprep.subr.mxu0 0.0
    %107 = vmatpush2.xpose.msra.mxu0 0.0
    %108 = vmatprep.subr.mxu0 0.0
    %109 = vmatpush2.xpose.msra.mxu0 0.0
    %110 = vmatprep.subr.mxu0 0.0
    %111 = vmatpush2.xpose.msra.mxu0 0.0
    %112 = vmatprep.subr.mxu0 0.0
    %113 = vmatpush2.xpose.msra.mxu0 0.0
    %114 = vmatprep.subr.mxu0 0.0
    %115 = vmatpush2.xpose.msra.mxu0 0.0
    %116 = vmatprep.subr.mxu0 0.0
    %117 = vmatpush2.xpose.msra.mxu0 0.0
    %118 = vmatprep.subr.mxu0 0.0
    %119 = vmatpush2.xpose.msra.mxu0 0.0
    %120 = vmatprep.subr.mxu0 0.0
    %121 = vmatpush2.xpose.msra.mxu0 0.0
    %122 = vmatprep.mubr.f32.mxu0 0.0
    %123 = vmatmul.mubr.f32.gmra.mxu0 %v41
    %v124 = vpop.f32.mrf.mxu0
    %v125 = vadd.f32 0.0, %v124
    %v126 = vpop.f32.mrf.mxu0
    %127 = vdwg.mxu0
    %v128 = vlaneseq
    %v129 = vand.u32 %v128, 127
    %vm130 = vcmp.lt.s32.totalorder %v129, 64
    %v131 = vsel %vm130, %v125, -inf
    %132 = vmax.xlane.f32.xlu0 %v131
    %v133 = vpop.xlane.xlu0 %132
    %v134 = vsub.f32 %v131, %v133
    %v135 = vmul.f32 %v134, 1.442695
    %v136 = vpow.pop %v135
    %137 = vadd.xlane.f32.xlu0 %v136
    %v138 = vpop.xlane.xlu0 %137
    %v139 = vrcp.pop %v138
    %v140 = vmul.f32 %v136, %v139
    %vm141 = vcmp.gt.f32.partialorder %v140, 0.0025
    %v142 = vsel %vm141, %v140, 0.0
    %143 = vadd.xlane.f32.xlu0 %v142
    %v144 = vpop.xlane.xlu0 %143
    %v145 = vmax.f32 %v144, 1e-12
    %v146 = vrcp.pop %v145
    %v147 = vmul.f32 %v142, %v146
    %148 = vmatprep.subr.mxu0 0.0
    %149 = vmatpush1.msra.mxu0 %v57
    %150 = vmatprep.subr.mxu0 0.0
    %151 = vmatpush1.msra.mxu0 %v56
    %152 = vmatprep.subr.mxu0 0.0
    %153 = vmatpush1.msra.mxu0 %v55
    %154 = vmatprep.subr.mxu0 0.0
    %155 = vmatpush1.msra.mxu0 %v54
    %156 = vmatprep.subr.mxu0 0.0
    %157 = vmatpush1.msra.mxu0 %v53
    %158 = vmatprep.subr.mxu0 0.0
    %159 = vmatpush1.msra.mxu0 %v52
    %160 = vmatprep.subr.mxu0 0.0
    %161 = vmatpush1.msra.mxu0 %v51
    %162 = vmatprep.subr.mxu0 0.0
    %163 = vmatpush1.msra.mxu0 %v50
    %164 = vmatprep.subr.mxu0 0.0
    %165 = vmatpush1.msra.mxu0 %v49
    %166 = vmatprep.subr.mxu0 0.0
    %167 = vmatpush1.msra.mxu0 %v48
    %168 = vmatprep.subr.mxu0 0.0
    %169 = vmatpush1.msra.mxu0 %v47
    %170 = vmatprep.subr.mxu0 0.0
    %171 = vmatpush1.msra.mxu0 %v46
    %172 = vmatprep.subr.mxu0 0.0
    %173 = vmatpush1.msra.mxu0 %v45
    %174 = vmatprep.subr.mxu0 0.0
    %175 = vmatpush1.msra.mxu0 %v44
    %176 = vmatprep.subr.mxu0 0.0
    %177 = vmatpush1.msra.mxu0 %v43
    %178 = vmatprep.subr.mxu0 0.0
    %179 = vmatpush1.msra.mxu0 %v42
    %180 = vmatprep.subr.mxu0 0.0
    %181 = vmatpush2.msra.mxu0 0.0
    %182 = vmatprep.subr.mxu0 0.0
    %183 = vmatpush2.msra.mxu0 0.0
    %184 = vmatprep.subr.mxu0 0.0
    %185 = vmatpush2.msra.mxu0 0.0
    %186 = vmatprep.subr.mxu0 0.0
    %187 = vmatpush2.msra.mxu0 0.0
    %188 = vmatprep.subr.mxu0 0.0
    %189 = vmatpush2.msra.mxu0 0.0
    %190 = vmatprep.subr.mxu0 0.0
    %191 = vmatpush2.msra.mxu0 0.0
    %192 = vmatprep.subr.mxu0 0.0
    %193 = vmatpush2.msra.mxu0 0.0
    %194 = vmatprep.subr.mxu0 0.0
    %195 = vmatpush2.msra.mxu0 0.0
    %196 = vmatprep.subr.mxu0 0.0
    %197 = vmatpush2.msra.mxu0 0.0
    %198 = vmatprep.subr.mxu0 0.0
    %199 = vmatpush2.msra.mxu0 0.0
    %200 = vmatprep.subr.mxu0 0.0
    %201 = vmatpush2.msra.mxu0 0.0
    %202 = vmatprep.subr.mxu0 0.0
    %203 = vmatpush2.msra.mxu0 0.0
    %204 = vmatprep.subr.mxu0 0.0
    %205 = vmatpush2.msra.mxu0 0.0
    %206 = vmatprep.subr.mxu0 0.0
    %207 = vmatpush2.msra.mxu0 0.0
    %208 = vmatprep.subr.mxu0 0.0
    %209 = vmatpush2.msra.mxu0 0.0
    %210 = vmatprep.subr.mxu0 0.0
    %211 = vmatpush2.msra.mxu0 0.0
    %212 = vmatprep.mubr.f32.mxu0 0.0
    %213 = vmatmul.mubr.f32.gmra.mxu0 %v147
    %v214 = vpop.f32.mrf.mxu0
    %v215 = vadd.f32 0.0, %v214
    %v216 = vpop.f32.mrf.mxu0
    %217 = vdwg.mxu0
    %218 = vst [vmem:[#allocation7] sm:$0xff] %v215
    %219 = vst [vmem:[#allocation8] sm:$0xff] %v147
    // Predicated region
    $region18: #{tpu_custom_call.1} parent=1 // pred_check
      _
    $region19: #{tpu_custom_call.1} parent=1 // pred_check_branch
      %221 = sbr.rel (0) target = $region21
    $region20: #{tpu_custom_call.1} parent=1 // pred_region
      %s223 = ssub.s32 128, 128
      %224 = vsyncadd [#allocation4], %s223
      %s226 = sshll.u32 [#allocation7], 4
      %s227 = int_to_ptr.vmem [resolvable:$true] %s226
      %229 = dma.vmem_to_hbm [thread:$0]  %s227, 128, %s2, [#allocation4]
    $region21: #{tpu_custom_call.1} parent=1 // pred_fallthru
      _
    // Predicated region
    $region22: #{tpu_custom_call.1} parent=1 // pred_check
      _
    $region23: #{tpu_custom_call.1} parent=1 // pred_check_branch
      %231 = sbr.rel (0) target = $region25
    $region24: #{tpu_custom_call.1} parent=1 // pred_region
      %s233 = ssub.s32 128, 128
      %234 = vsyncadd [#allocation9], %s233
      %s236 = sshll.u32 [#allocation8], 4
      %s237 = int_to_ptr.vmem [resolvable:$true] %s236
      %239 = dma.vmem_to_hbm [thread:$0]  %s237, 128, %s3, [#allocation9]
    $region25: #{tpu_custom_call.1} parent=1 // pred_fallthru
      _
    // Predicated region
    $region26: #{tpu_custom_call.1} parent=1 // pred_check
      _
    $region27: #{tpu_custom_call.1} parent=1 // pred_check_branch
      %241 = sbr.rel (0) target = $region29
    $region28: #{tpu_custom_call.1} parent=1 // pred_region
      %242 = dma.done [#allocation4], 128
    $region29: #{tpu_custom_call.1} parent=1 // pred_fallthru
      _
    // Predicated region
    $region30: #{tpu_custom_call.1} parent=1 // pred_check
      _
    $region31: #{tpu_custom_call.1} parent=1 // pred_check_branch
      %244 = sbr.rel (0) target = $region33
    $region32: #{tpu_custom_call.1} parent=1 // pred_region
      %245 = dma.done [#allocation9], 128
    $region33: #{tpu_custom_call.1} parent=1 // pred_fallthru
      _
    %246 = vsyncpa [#allocation3], 1
    %247 = vsyncpa [#allocation6], 1
    %248 = vsyncpa [#allocation4], 1
    %249 = vsyncpa [#allocation9], 1

// kernel: tpu_custom_call.1
$region0: #{tpu_custom_call.1}
  #allocation0 [shape = 'u32[]', space=smem, size = 0x4, offset = 0x4, fixed_abs, tag = 'smem constant byte address 0x4 - core index']
  #allocation1 [shape = 'u32[144,128]{1,0:T(1,128)}', space=vmem, size = 0x12000, scoped, tag = 'internal scratch']
  %s0 = inlined_call_operand.hbm [shape: f32[8,128], index: 0, kind: input, shape index: {}]
  %s1 = inlined_call_operand.hbm [shape: f32[128,128], index: 1, kind: input, shape index: {}]
  %s2 = inlined_call_operand.hbm [shape: f32[8,128], index: 2, kind: output, shape index: {0}]
  %s3 = inlined_call_operand.hbm [shape: f32[8,128], index: 3, kind: output, shape index: {1}]
  %4 = xla_tuple %s2, %s3
  %s5 = sld [smem:[#allocation0]]
  $region34: #{tpu_custom_call.1} parent=0
    _
  %s7 = ssub.s32 1, %s5
  %s8 = scalar_select 0, %s7, %s5
  $region1: #{tpu_custom_call.1} parent=0
    #allocation2 [shape = 'u8[4096]{0}', space=vmem, size = 0x1000, scoped, tag = 'input window, operand 0, single buffered']
    #allocation3 [shape = 's32[1]{0}', space=sflag, size = 0x4, scoped, tag = 'scoped memory for tpu_custom_call.1']
    #allocation4 [shape = 's32[1]{0}', space=sflag, size = 0x4, scoped, tag = 'scoped memory for tpu_custom_call.1']
    #allocation5 [shape = 'u8[65536]{0}', space=vmem, size = 0x10000, scoped, tag = 'input window, operand 1, single buffered']
    #allocation6 [shape = 's32[1]{0}', space=sflag, size = 0x4, scoped, tag = 'scoped memory for tpu_custom_call.1']
    #allocation7 [shape = 'u8[4096]{0}', space=vmem, size = 0x1000, scoped, tag = 'output window, operand 0, single buffered']
    #allocation8 [shape = 'u8[4096]{0}', space=vmem, size = 0x1000, scoped, tag = 'output window, operand 1, single buffered']
    #allocation9 [shape = 's32[1]{0}', space=sflag, size = 0x4, scoped, tag = 'scoped memory for tpu_custom_call.1']
    %9 = vsyncpa [#allocation3], 0
    %10 = vsyncpa [#allocation6], 0
    %11 = vsyncpa [#allocation4], 0
    %12 = vsyncpa [#allocation9], 0
    // Predicated region
    $region2: #{tpu_custom_call.1} parent=1 // pred_check
      _
    $region3: #{tpu_custom_call.1} parent=1 // pred_check_branch
      %14 = sbr.rel (0) target = $region5
    $region4: #{tpu_custom_call.1} parent=1 // pred_region
      %s16 = ssub.s32 128, 128
      %17 = vsyncadd [#allocation3], %s16
      %s19 = sshll.u32 [#allocation2], 4
      %s20 = int_to_ptr.vmem [resolvable:$true] %s19
      %22 = dma.hbm_to_vmem [thread:$0]  %s0, 128, %s20, [#allocation3]
    $region5: #{tpu_custom_call.1} parent=1 // pred_fallthru
      _
    // Predicated region
    $region6: #{tpu_custom_call.1} parent=1 // pred_check
      _
    $region7: #{tpu_custom_call.1} parent=1 // pred_check_branch
      %24 = sbr.rel (0) target = $region9
    $region8: #{tpu_custom_call.1} parent=1 // pred_region
      %s26 = ssub.s32 2048, 2048
      %27 = vsyncadd [#allocation6], %s26
      %s28 = sshll.u32 [#allocation5], 4
      %s29 = int_to_ptr.vmem [resolvable:$true] %s28
      %34 = dma.hbm_to_vmem [thread:$0]  %s1, 2048, %s29, [#allocation6], 128, 128, 8
    $region9: #{tpu_custom_call.1} parent=1 // pred_fallthru
      _
    // Predicated region
    $region10: #{tpu_custom_call.1} parent=1 // pred_check
      _
    $region11: #{tpu_custom_call.1} parent=1 // pred_check_branch
      %36 = sbr.rel (0) target = $region13
    $region12: #{tpu_custom_call.1} parent=1 // pred_region
      %37 = dma.done [#allocation3], 128
    $region13: #{tpu_custom_call.1} parent=1 // pred_fallthru
      _
    // Predicated region
    $region14: #{tpu_custom_call.1} parent=1 // pred_check
      _
    $region15: #{tpu_custom_call.1} parent=1 // pred_check_branch
      %39 = sbr.rel (0) target = $region17
    $region16: #{tpu_custom_call.1} parent=1 // pred_region
      %40 = dma.done [#allocation6], 2048
    $region17: #{tpu_custom_call.1} parent=1 // pred_fallthru
      _
    %v41 = vld [vmem:[#allocation2] sm:$0xff]
    %v42 = vld [vmem:[#allocation5] sm:$0xff]
    %v43 = vld [vmem:[#allocation5 + $0x8] sm:$0xff]
    %v44 = vld [vmem:[#allocation5 + $0x10] sm:$0xff]
    %v45 = vld [vmem:[#allocation5 + $0x18] sm:$0xff]
    %v46 = vld [vmem:[#allocation5 + $0x20] sm:$0xff]
    %v47 = vld [vmem:[#allocation5 + $0x28] sm:$0xff]
    %v48 = vld [vmem:[#allocation5 + $0x30] sm:$0xff]
    %v49 = vld [vmem:[#allocation5 + $0x38] sm:$0xff]
    %v50 = vld [vmem:[#allocation5 + $0x40] sm:$0xff]
    %v51 = vld [vmem:[#allocation5 + $0x48] sm:$0xff]
    %v52 = vld [vmem:[#allocation5 + $0x50] sm:$0xff]
    %v53 = vld [vmem:[#allocation5 + $0x58] sm:$0xff]
    %v54 = vld [vmem:[#allocation5 + $0x60] sm:$0xff]
    %v55 = vld [vmem:[#allocation5 + $0x68] sm:$0xff]
    %v56 = vld [vmem:[#allocation5 + $0x70] sm:$0xff]
    %v57 = vld [vmem:[#allocation5 + $0x78] sm:$0xff]
    %58 = vmatprep.subr.mxu0 0.0
    %59 = vmatpush1.xpose.msra.mxu0 %v57
    %60 = vmatprep.subr.mxu0 0.0
    %61 = vmatpush1.xpose.msra.mxu0 %v56
    %62 = vmatprep.subr.mxu0 0.0
    %63 = vmatpush1.xpose.msra.mxu0 %v55
    %64 = vmatprep.subr.mxu0 0.0
    %65 = vmatpush1.xpose.msra.mxu0 %v54
    %66 = vmatprep.subr.mxu0 0.0
    %67 = vmatpush1.xpose.msra.mxu0 %v53
    %68 = vmatprep.subr.mxu0 0.0
    %69 = vmatpush1.xpose.msra.mxu0 %v52
    %70 = vmatprep.subr.mxu0 0.0
    %71 = vmatpush1.xpose.msra.mxu0 %v51
    %72 = vmatprep.subr.mxu0 0.0
    %73 = vmatpush1.xpose.msra.mxu0 %v50
    %74 = vmatprep.subr.mxu0 0.0
    %75 = vmatpush1.xpose.msra.mxu0 %v49
    %76 = vmatprep.subr.mxu0 0.0
    %77 = vmatpush1.xpose.msra.mxu0 %v48
    %78 = vmatprep.subr.mxu0 0.0
    %79 = vmatpush1.xpose.msra.mxu0 %v47
    %80 = vmatprep.subr.mxu0 0.0
    %81 = vmatpush1.xpose.msra.mxu0 %v46
    %82 = vmatprep.subr.mxu0 0.0
    %83 = vmatpush1.xpose.msra.mxu0 %v45
    %84 = vmatprep.subr.mxu0 0.0
    %85 = vmatpush1.xpose.msra.mxu0 %v44
    %86 = vmatprep.subr.mxu0 0.0
    %87 = vmatpush1.xpose.msra.mxu0 %v43
    %88 = vmatprep.subr.mxu0 0.0
    %89 = vmatpush1.xpose.msra.mxu0 %v42
    %90 = vmatprep.subr.mxu0 0.0
    %91 = vmatpush2.xpose.msra.mxu0 0.0
    %92 = vmatprep.subr.mxu0 0.0
    %93 = vmatpush2.xpose.msra.mxu0 0.0
    %94 = vmatprep.subr.mxu0 0.0
    %95 = vmatpush2.xpose.msra.mxu0 0.0
    %96 = vmatprep.subr.mxu0 0.0
    %97 = vmatpush2.xpose.msra.mxu0 0.0
    %98 = vmatprep.subr.mxu0 0.0
    %99 = vmatpush2.xpose.msra.mxu0 0.0
    %100 = vmatprep.subr.mxu0 0.0
    %101 = vmatpush2.xpose.msra.mxu0 0.0
    %102 = vmatprep.subr.mxu0 0.0
    %103 = vmatpush2.xpose.msra.mxu0 0.0
    %104 = vmatprep.subr.mxu0 0.0
    %105 = vmatpush2.xpose.msra.mxu0 0.0
    %106 = vmatprep.subr.mxu0 0.0
    %107 = vmatpush2.xpose.msra.mxu0 0.0
    %108 = vmatprep.subr.mxu0 0.0
    %109 = vmatpush2.xpose.msra.mxu0 0.0
    %110 = vmatprep.subr.mxu0 0.0
    %111 = vmatpush2.xpose.msra.mxu0 0.0
    %112 = vmatprep.subr.mxu0 0.0
    %113 = vmatpush2.xpose.msra.mxu0 0.0
    %114 = vmatprep.subr.mxu0 0.0
    %115 = vmatpush2.xpose.msra.mxu0 0.0
    %116 = vmatprep.subr.mxu0 0.0
    %117 = vmatpush2.xpose.msra.mxu0 0.0
    %118 = vmatprep.subr.mxu0 0.0
    %119 = vmatpush2.xpose.msra.mxu0 0.0
    %120 = vmatprep.subr.mxu0 0.0
    %121 = vmatpush2.xpose.msra.mxu0 0.0
    %122 = vmatprep.mubr.f32.mxu0 0.0
    %123 = vmatmul.mubr.f32.gmra.mxu0 %v41
    %v124 = vpop.f32.mrf.mxu0
    %v125 = vadd.f32 0.0, %v124
    %v126 = vpop.f32.mrf.mxu0
    %127 = vdwg.mxu0
    %v128 = vlaneseq
    %v129 = vand.u32 %v128, 127
    %vm130 = vcmp.lt.s32.totalorder %v129, 64
    %v131 = vsel %vm130, %v125, -inf
    %132 = vmax.xlane.f32.xlu0 %v131
    %v133 = vpop.xlane.xlu0 %132
    %v134 = vsub.f32 %v131, %v133
    %v135 = vmul.f32 %v134, 1.442695
    %v136 = vpow.pop %v135
    %137 = vadd.xlane.f32.xlu0 %v136
    %v138 = vpop.xlane.xlu0 %137
    %v139 = vrcp.pop %v138
    %v140 = vmul.f32 %v136, %v139
    %vm141 = vcmp.gt.f32.partialorder %v140, 0.0025
    %v142 = vsel %vm141, %v140, 0.0
    %143 = vadd.xlane.f32.xlu0 %v142
    %v144 = vpop.xlane.xlu0 %143
    %v145 = vmax.f32 %v144, 1e-12
    %v146 = vrcp.pop %v145
    %v147 = vmul.f32 %v142, %v146
    %148 = vmatprep.subr.mxu0 0.0
    %149 = vmatpush1.msra.mxu0 %v57
    %150 = vmatprep.subr.mxu0 0.0
    %151 = vmatpush1.msra.mxu0 %v56
    %152 = vmatprep.subr.mxu0 0.0
    %153 = vmatpush1.msra.mxu0 %v55
    %154 = vmatprep.subr.mxu0 0.0
    %155 = vmatpush1.msra.mxu0 %v54
    %156 = vmatprep.subr.mxu0 0.0
    %157 = vmatpush1.msra.mxu0 %v53
    %158 = vmatprep.subr.mxu0 0.0
    %159 = vmatpush1.msra.mxu0 %v52
    %160 = vmatprep.subr.mxu0 0.0
    %161 = vmatpush1.msra.mxu0 %v51
    %162 = vmatprep.subr.mxu0 0.0
    %163 = vmatpush1.msra.mxu0 %v50
    %164 = vmatprep.subr.mxu0 0.0
    %165 = vmatpush1.msra.mxu0 %v49
    %166 = vmatprep.subr.mxu0 0.0
    %167 = vmatpush1.msra.mxu0 %v48
    %168 = vmatprep.subr.mxu0 0.0
    %169 = vmatpush1.msra.mxu0 %v47
    %170 = vmatprep.subr.mxu0 0.0
    %171 = vmatpush1.msra.mxu0 %v46
    %172 = vmatprep.subr.mxu0 0.0
    %173 = vmatpush1.msra.mxu0 %v45
    %174 = vmatprep.subr.mxu0 0.0
    %175 = vmatpush1.msra.mxu0 %v44
    %176 = vmatprep.subr.mxu0 0.0
    %177 = vmatpush1.msra.mxu0 %v43
    %178 = vmatprep.subr.mxu0 0.0
    %179 = vmatpush1.msra.mxu0 %v42
    %180 = vmatprep.subr.mxu0 0.0
    %181 = vmatpush2.msra.mxu0 0.0
    %182 = vmatprep.subr.mxu0 0.0
    %183 = vmatpush2.msra.mxu0 0.0
    %184 = vmatprep.subr.mxu0 0.0
    %185 = vmatpush2.msra.mxu0 0.0
    %186 = vmatprep.subr.mxu0 0.0
    %187 = vmatpush2.msra.mxu0 0.0
    %188 = vmatprep.subr.mxu0 0.0
    %189 = vmatpush2.msra.mxu0 0.0
    %190 = vmatprep.subr.mxu0 0.0
    %191 = vmatpush2.msra.mxu0 0.0
    %192 = vmatprep.subr.mxu0 0.0
    %193 = vmatpush2.msra.mxu0 0.0
    %194 = vmatprep.subr.mxu0 0.0
    %195 = vmatpush2.msra.mxu0 0.0
    %196 = vmatprep.subr.mxu0 0.0
    %197 = vmatpush2.msra.mxu0 0.0
    %198 = vmatprep.subr.mxu0 0.0
    %199 = vmatpush2.msra.mxu0 0.0
    %200 = vmatprep.subr.mxu0 0.0
    %201 = vmatpush2.msra.mxu0 0.0
    %202 = vmatprep.subr.mxu0 0.0
    %203 = vmatpush2.msra.mxu0 0.0
    %204 = vmatprep.subr.mxu0 0.0
    %205 = vmatpush2.msra.mxu0 0.0
    %206 = vmatprep.subr.mxu0 0.0
    %207 = vmatpush2.msra.mxu0 0.0
    %208 = vmatprep.subr.mxu0 0.0
    %209 = vmatpush2.msra.mxu0 0.0
    %210 = vmatprep.subr.mxu0 0.0
    %211 = vmatpush2.msra.mxu0 0.0
    %212 = vmatprep.mubr.f32.mxu0 0.0
    %213 = vmatmul.mubr.f32.gmra.mxu0 %v147
    %v214 = vpop.f32.mrf.mxu0
    %v215 = vadd.f32 0.0, %v214
    %v216 = vpop.f32.mrf.mxu0
    %217 = vdwg.mxu0
    %218 = vst [vmem:[#allocation7] sm:$0xff] %v215
    %219 = vst [vmem:[#allocation8] sm:$0xff] %v147
    // Predicated region
    $region18: #{tpu_custom_call.1} parent=1 // pred_check
      _
    $region19: #{tpu_custom_call.1} parent=1 // pred_check_branch
      %221 = sbr.rel (0) target = $region21
    $region20: #{tpu_custom_call.1} parent=1 // pred_region
      %s223 = ssub.s32 128, 128
      %224 = vsyncadd [#allocation4], %s223
      %s226 = sshll.u32 [#allocation7], 4
      %s227 = int_to_ptr.vmem [resolvable:$true] %s226
      %229 = dma.vmem_to_hbm [thread:$0]  %s227, 128, %s2, [#allocation4]
    $region21: #{tpu_custom_call.1} parent=1 // pred_fallthru
      _
    // Predicated region
    $region22: #{tpu_custom_call.1} parent=1 // pred_check
      _
    $region23: #{tpu_custom_call.1} parent=1 // pred_check_branch
      %231 = sbr.rel (0) target = $region25
    $region24: #{tpu_custom_call.1} parent=1 // pred_region
      %s233 = ssub.s32 128, 128
      %234 = vsyncadd [#allocation9], %s233
      %s236 = sshll.u32 [#allocation8], 4
      %s237 = int_to_ptr.vmem [resolvable:$true] %s236
      %239 = dma.vmem_to_hbm [thread:$0]  %s237, 128, %s3, [#allocation9]
    $region25: #{tpu_custom_call.1} parent=1 // pred_fallthru
      _
    // Predicated region
    $region26: #{tpu_custom_call.1} parent=1 // pred_check
      _
    $region27: #{tpu_custom_call.1} parent=1 // pred_check_branch
      %241 = sbr.rel (0) target = $region29
    $region28: #{tpu_custom_call.1} parent=1 // pred_region
      %242 = dma.done [#allocation4], 128
    $region29: #{tpu_custom_call.1} parent=1 // pred_fallthru
      _
    // Predicated region
    $region30: #{tpu_custom_call.1} parent=1 // pred_check
      _
    $region31: #{tpu_custom_call.1} parent=1 // pred_check_branch
      %244 = sbr.rel (0) target = $region33
    $region32: #{tpu_custom_call.1} parent=1 // pred_region
      %245 = dma.done [#allocation9], 128
    $region33: #{tpu_custom_call.1} parent=1 // pred_fallthru
      _
    %246 = vsyncpa [#allocation3], 1
    %247 = vsyncpa [#allocation6], 1
    %248 = vsyncpa [#allocation4], 1
    %249 = vsyncpa [#allocation9], 1

</llo_original>
